<compile_context>
chip_gen: v7x
topology: tpu7x:2x2x1
jax: 0.10.0
libtpu: 0.0.40
codegen_flags: <defaults>
</compile_context>

<pallas_src>
import jax
import jax.numpy as jnp
from jax.experimental import pallas as pl
from jax.experimental.pallas import tpu as pltpu

ENCODED_SPACE_DIM = 32            # `args.latent` in the reference script
HIDDEN_DIM = 2 * ENCODED_SPACE_DIM
HIDDEN_PAD = 128                  # pad hidden dim to a full 128-lane vreg
OUT_DIM = 128                     # fixed by nn.Linear(2*latent, 128)
BATCH = 8

SMALL_B_MAX = 1024                # single resident block, no grid
TILE_B = 2048                     # max batch tile for the gridded path


def decoder_kernel(x_ref, w1_ref, b1_ref, w2_ref, b2_ref, o_ref):
    # In-kernel cast of the streamed f32 x tile to bf16 (MXU operand dtype).
    x_bf = x_ref[...].astype(jnp.bfloat16)
    # Layer 1: bf16 operands on the MXU, f32 accumulation.
    h = jnp.dot(x_bf, w1_ref[...], preferred_element_type=jnp.float32)
    # (1, 128) bias broadcasts over the batch tile (VPU sublane broadcast),
    # then tanh in bf16 (EUP bf16 path on v6e/v7x; needed as bf16 for MXU #2).
    h_act = jnp.tanh((h + b1_ref[...]).astype(jnp.bfloat16))
    # Layer 2: bf16 MXU matmul, f32 accumulation, f32 bias add.
    y = jnp.dot(h_act, w2_ref[...], preferred_element_type=jnp.float32)
    o_ref[...] = (y + b2_ref[...]).astype(o_ref.dtype)


def init_params(key):
    """nn.Linear-style U(-1/sqrt(fan_in), 1/sqrt(fan_in)) init (f32 reference)."""
    k1, k2, k3, k4 = jax.random.split(key, 4)
    bound1 = 1.0 / jnp.sqrt(ENCODED_SPACE_DIM)
    bound2 = 1.0 / jnp.sqrt(HIDDEN_DIM)
    # Stored as (in, out) == transpose of PyTorch's (out, in) weight layout.
    w1 = jax.random.uniform(k1, (ENCODED_SPACE_DIM, HIDDEN_DIM),
                            jnp.float32, -bound1, bound1)
    b1 = jax.random.uniform(k2, (1, HIDDEN_DIM), jnp.float32, -bound1, bound1)
    w2 = jax.random.uniform(k3, (HIDDEN_DIM, OUT_DIM),
                            jnp.float32, -bound2, bound2)
    b2 = jax.random.uniform(k4, (1, OUT_DIM), jnp.float32, -bound2, bound2)
    return w1, b1, w2, b2


def pack_params(w1, b1, w2, b2):
    """Pad hidden dim to 128 lanes; cast matmul operands to bf16, biases stay f32.

    Correctness invariant: b1's padded lanes MUST stay exactly zero
    (tanh(0) = 0) and the padded rows of w2 MUST stay exactly zero, so the
    padding contributes nothing to the output.
    """
    pad = HIDDEN_PAD - HIDDEN_DIM
    w1p = jnp.pad(w1, ((0, 0), (0, pad))).astype(jnp.bfloat16)   # (L, 128) bf16
    b1p = jnp.pad(b1, ((0, 0), (0, pad)))                        # (1, 128) f32
    w2p = jnp.pad(w2, ((0, pad), (0, 0))).astype(jnp.bfloat16)   # (128, 128) bf16
    return w1p, b1p, w2p, b2


def _pick_tile(B, max_tile=TILE_B):
    """Batch tile: >= 2 grid steps (keeps both v7x TCs busy on the parallel
    axis), multiple of 8 sublanes, capped at max_tile."""
    half = -(-B // 2)                       # ceil(B / 2)
    tile = min(max_tile, -(-half // 8) * 8)  # round up to sublane multiple
    return max(tile, 8)


def decoder_forward(x, w1p, b1p, w2p, b2p, *, out_dtype=None):
    B, L = x.shape
    HP = w1p.shape[1]
    O = w2p.shape[1]
    # bf16 output would cut HBM bytes ~40% more; default keeps module semantics.
    out_dtype = x.dtype if out_dtype is None else out_dtype

    if B <= SMALL_B_MAX:
        # Single resident block: no grid, no pipelining machinery.
        vmem_spec = pl.BlockSpec(memory_space=pltpu.MemorySpace.VMEM)
        return pl.pallas_call(
            decoder_kernel,
            out_shape=jax.ShapeDtypeStruct((B, O), out_dtype),
            in_specs=[vmem_spec] * 5,
            out_specs=vmem_spec,
        )(x, w1p, b1p, w2p, b2p)

    # Large batch: tile the batch axis; weights/biases stay VMEM-resident
    # (constant index_map -> DMA'd once).  Ragged tail handled by Pallas
    # clipping the partial block (no wrapper-side pad/copy of x).
    tile_b = _pick_tile(B)
    grid = (pl.cdiv(B, tile_b),)

    return pl.pallas_call(
        decoder_kernel,
        out_shape=jax.ShapeDtypeStruct((B, O), out_dtype),
        grid=grid,
        in_specs=[
            pl.BlockSpec((tile_b, L), lambda i: (i, 0)),    # x: streamed f32 tile
            pl.BlockSpec((L, HP), lambda i: (0, 0)),        # w1: resident
            pl.BlockSpec((1, HP), lambda i: (0, 0)),        # b1: resident (1,128)
            pl.BlockSpec((HP, O), lambda i: (0, 0)),        # w2: resident
            pl.BlockSpec((1, O), lambda i: (0, 0)),         # b2: resident (1,128)
        ],
        out_specs=pl.BlockSpec((tile_b, O), lambda i: (i, 0)),
        compiler_params=pltpu.CompilerParams(
            dimension_semantics=("parallel",),
            # Even at tile_b=2048, double-buffered tiles are ~2.5 MiB; 32 MiB
            # leaves big headroom and stays under v7x's 64 MiB physical VMEM.
            vmem_limit_bytes=32 * 1024 * 1024,
        ),
    )(x, w1p, b1p, w2p, b2p)


if __name__ == "__main__":
    key = jax.random.PRNGKey(0)
    kx, kx2, kp = jax.random.split(key, 3)

    w1, b1, w2, b2 = init_params(kp)
    packed = pack_params(w1, b1, w2, b2)

    def reference(xv):
        return jnp.tanh(xv @ w1 + b1) @ w2 + b2

    # Small-batch path (single resident block, no grid).
    x_small = jax.random.normal(kx, (BATCH, ENCODED_SPACE_DIM), jnp.float32)
    out_small = jax.block_until_ready(decoder_forward(x_small, *packed))
    assert out_small.shape == (BATCH, OUT_DIM)
    # bf16 MXU operands + bf16 tanh -> compare against f32 reference loosely.
    assert jnp.allclose(out_small, reference(x_small), atol=3e-2, rtol=3e-2)

    # Large-batch path (batch-tiled grid, parallel semantics, ragged tail).
    B_LARGE = 1030
    x_large = jax.random.normal(kx2, (B_LARGE, ENCODED_SPACE_DIM), jnp.float32)
    out_large = jax.block_until_ready(decoder_forward(x_large, *packed))
    assert out_large.shape == (B_LARGE, OUT_DIM)
    assert jnp.allclose(out_large, reference(x_large), atol=3e-2, rtol=3e-2)

    print("KERNEL_OK")
</pallas_src>

<mosaic_0001>
module attributes {stable_mosaic.version = 11 : i64} {
  func.func @decoder_kernel(%arg0: memref<8x32xf32, #tpu.memory_space<vmem>>, %arg1: memref<32x128xbf16, #tpu.memory_space<vmem>>, %arg2: memref<1x128xf32, #tpu.memory_space<vmem>>, %arg3: memref<128x128xbf16, #tpu.memory_space<vmem>>, %arg4: memref<1x128xf32, #tpu.memory_space<vmem>>, %arg5: memref<8x128xf32, #tpu.memory_space<vmem>>) attributes {dimension_semantics = [], scalar_prefetch = 0 : i64, scratch_operands = 0 : i64, tpu.core_type = #tpu.core_type<tc>} {
    %c0 = arith.constant 0 : index
    %c0_0 = arith.constant 0 : index
    %0 = vector.load %arg0[%c0, %c0_0] : memref<8x32xf32, #tpu.memory_space<vmem>>, vector<8x32xf32>
    %1 = arith.truncf %0 : vector<8x32xf32> to vector<8x32xbf16>
    %c0_1 = arith.constant 0 : index
    %c0_2 = arith.constant 0 : index
    %2 = vector.load %arg1[%c0_1, %c0_2] : memref<32x128xbf16, #tpu.memory_space<vmem>>, vector<32x128xbf16>
    %cst = arith.constant dense<0.000000e+00> : vector<8x128xf32>
    %3 = tpu.matmul %1, %2, %cst {dimension_numbers = #tpu.dot_dimension_numbers<[1], [0], [0], [1], [0, 0, 1, 1], [], []>} : vector<8x32xbf16>, vector<32x128xbf16>, vector<8x128xf32> -> vector<8x128xf32>
    %c0_3 = arith.constant 0 : index
    %c0_4 = arith.constant 0 : index
    %4 = vector.load %arg2[%c0_3, %c0_4] : memref<1x128xf32, #tpu.memory_space<vmem>>, vector<1x128xf32>
    %5 = vector.broadcast %4 : vector<1x128xf32> to vector<8x128xf32>
    %6 = arith.addf %3, %5 : vector<8x128xf32>
    %7 = arith.truncf %6 : vector<8x128xf32> to vector<8x128xbf16>
    %8 = math.tanh %7 : vector<8x128xbf16>
    %c0_5 = arith.constant 0 : index
    %c0_6 = arith.constant 0 : index
    %9 = vector.load %arg3[%c0_5, %c0_6] : memref<128x128xbf16, #tpu.memory_space<vmem>>, vector<128x128xbf16>
    %cst_7 = arith.constant dense<0.000000e+00> : vector<8x128xf32>
    %10 = tpu.matmul %8, %9, %cst_7 {dimension_numbers = #tpu.dot_dimension_numbers<[1], [0], [0], [1], [0, 0, 1, 1], [], []>} : vector<8x128xbf16>, vector<128x128xbf16>, vector<8x128xf32> -> vector<8x128xf32>
    %c0_8 = arith.constant 0 : index
    %c0_9 = arith.constant 0 : index
    %11 = vector.load %arg4[%c0_8, %c0_9] : memref<1x128xf32, #tpu.memory_space<vmem>>, vector<1x128xf32>
    %12 = vector.broadcast %11 : vector<1x128xf32> to vector<8x128xf32>
    %13 = arith.addf %10, %12 : vector<8x128xf32>
    %c0_10 = arith.constant 0 : index
    %c0_11 = arith.constant 0 : index
    %14 = vector.load %arg5[%c0_10, %c0_11] : memref<8x128xf32, #tpu.memory_space<vmem>>, vector<8x128xf32>
    tpu.vector_store %arg5[%c0_10, %c0_11], %13 {strides = array<i32>} : memref<8x128xf32, #tpu.memory_space<vmem>>, vector<8x128xf32>,
    return
  }
}

</mosaic_0001>

<llo_original>
// kernel: tpu_custom_call.1
$region0: #{tpu_custom_call.1}
  #allocation0 [shape = 'u32[]', space=smem, size = 0x4, offset = 0x4, fixed_abs, tag = 'smem constant byte address 0x4 - core index']
  #allocation1 [shape = 'u32[144,128]{1,0:T(1,128)}', space=vmem, size = 0x12000, scoped, tag = 'internal scratch']
  %s0 = inlined_call_operand.hbm [shape: f32[8,32], index: 0, kind: input, shape index: {}]
  %s1 = inlined_call_operand.hbm [shape: bf16[32,128], index: 1, kind: input, shape index: {}]
  %s2 = inlined_call_operand.vmem [shape: f32[1,128], index: 2, kind: input, shape index: {}]
  %s3 = inlined_call_operand.hbm [shape: bf16[128,128], index: 3, kind: input, shape index: {}]
  %s4 = inlined_call_operand.vmem [shape: f32[1,128], index: 4, kind: input, shape index: {}]
  %s5 = inlined_call_operand.hbm [shape: f32[8,128], index: 5, kind: output, shape index: {}]
  %s6 = sld [smem:[#allocation0]]
  $region42: #{tpu_custom_call.1} parent=0
    _
  %s8 = ssub.s32 1, %s6
  %s9 = scalar_select 0, %s8, %s6
  $region1: #{tpu_custom_call.1} parent=0
    #allocation2 [shape = 'u8[4096]{0}', space=vmem, size = 0x1000, scoped, tag = 'input window, operand 0, single buffered']
    #allocation3 [shape = 's32[1]{0}', space=sflag, size = 0x4, scoped, tag = 'scoped memory for tpu_custom_call.1']
    #allocation4 [shape = 's32[1]{0}', space=sflag, size = 0x4, scoped, tag = 'scoped memory for tpu_custom_call.1']
    #allocation5 [shape = 'u8[8192]{0}', space=vmem, size = 0x2000, scoped, tag = 'input window, operand 1, single buffered']
    #allocation6 [shape = 's32[1]{0}', space=sflag, size = 0x4, scoped, tag = 'scoped memory for tpu_custom_call.1']
    #allocation7 [shape = 'u8[32768]{0}', space=vmem, size = 0x8000, scoped, tag = 'input window, operand 3, single buffered']
    #allocation8 [shape = 'u8[4096]{0}', space=vmem, size = 0x1000, scoped, tag = 'output window, operand 0, single buffered']
    %10 = vsyncpa [#allocation3], 0
    %11 = vsyncpa [#allocation6], 0
    %12 = vsyncpa [#allocation4], 0
    // Predicated region
    $region2: #{tpu_custom_call.1} parent=1 // pred_check
      _
    $region3: #{tpu_custom_call.1} parent=1 // pred_check_branch
      %14 = sbr.rel (0) target = $region5
    $region4: #{tpu_custom_call.1} parent=1 // pred_region
      %s16 = ssub.s32 128, 128
      %17 = vsyncadd [#allocation3], %s16
      %s19 = sshll.u32 [#allocation2], 4
      %s20 = int_to_ptr.vmem [resolvable:$true] %s19
      %22 = dma.hbm_to_vmem [thread:$0]  %s0, 128, %s20, [#allocation3]
    $region5: #{tpu_custom_call.1} parent=1 // pred_fallthru
      _
    // Predicated region
    $region6: #{tpu_custom_call.1} parent=1 // pred_check
      _
    $region7: #{tpu_custom_call.1} parent=1 // pred_check_branch
      %24 = sbr.rel (0) target = $region9
    $region8: #{tpu_custom_call.1} parent=1 // pred_region
      %s26 = ssub.s32 256, 256
      %27 = vsyncadd [#allocation6], %s26
      %s28 = sshll.u32 [#allocation5], 4
      %s29 = int_to_ptr.vmem [resolvable:$true] %s28
      %34 = dma.hbm_to_vmem [thread:$0]  %s1, 256, %s29, [#allocation6], 64, 64, 4
    $region9: #{tpu_custom_call.1} parent=1 // pred_fallthru
      _
    // Predicated region
    $region10: #{tpu_custom_call.1} parent=1 // pred_check
      _
    $region11: #{tpu_custom_call.1} parent=1 // pred_check_branch
      %36 = sbr.rel (0) target = $region13
    $region12: #{tpu_custom_call.1} parent=1 // pred_region
      _
    $region13: #{tpu_custom_call.1} parent=1 // pred_fallthru
      _
    // Predicated region
    $region14: #{tpu_custom_call.1} parent=1 // pred_check
      _
    $region15: #{tpu_custom_call.1} parent=1 // pred_check_branch
      %38 = sbr.rel (0) target = $region17
    $region16: #{tpu_custom_call.1} parent=1 // pred_region
      %s40 = ssub.s32 1024, 1024
      %41 = vsyncadd [#allocation6], %s40
      %s42 = sshll.u32 [#allocation7], 4
      %s43 = int_to_ptr.vmem [resolvable:$true] %s42
      %48 = dma.hbm_to_vmem [thread:$0]  %s3, 1024, %s43, [#allocation6], 64, 64, 4
    $region17: #{tpu_custom_call.1} parent=1 // pred_fallthru
      _
    // Predicated region
    $region18: #{tpu_custom_call.1} parent=1 // pred_check
      _
    $region19: #{tpu_custom_call.1} parent=1 // pred_check_branch
      %50 = sbr.rel (0) target = $region21
    $region20: #{tpu_custom_call.1} parent=1 // pred_region
      _
    $region21: #{tpu_custom_call.1} parent=1 // pred_fallthru
      _
    // Predicated region
    $region22: #{tpu_custom_call.1} parent=1 // pred_check
      _
    $region23: #{tpu_custom_call.1} parent=1 // pred_check_branch
      %52 = sbr.rel (0) target = $region25
    $region24: #{tpu_custom_call.1} parent=1 // pred_region
      %53 = dma.done [#allocation3], 128
    $region25: #{tpu_custom_call.1} parent=1 // pred_fallthru
      _
    // Predicated region
    $region26: #{tpu_custom_call.1} parent=1 // pred_check
      _
    $region27: #{tpu_custom_call.1} parent=1 // pred_check_branch
      %55 = sbr.rel (0) target = $region29
    $region28: #{tpu_custom_call.1} parent=1 // pred_region
      %56 = dma.done [#allocation6], 256
    $region29: #{tpu_custom_call.1} parent=1 // pred_fallthru
      _
    // Predicated region
    $region30: #{tpu_custom_call.1} parent=1 // pred_check
      _
    $region31: #{tpu_custom_call.1} parent=1 // pred_check_branch
      %58 = sbr.rel (0) target = $region33
    $region32: #{tpu_custom_call.1} parent=1 // pred_region
      %59 = dma.done [#allocation6], 1024
    $region33: #{tpu_custom_call.1} parent=1 // pred_fallthru
      _
    %v61 = vld [vmem:[#allocation2] sm:$0xff]
    %v62 = vpack.c.bf16 %v61, %v61
    %v63 = vld [vmem:[#allocation5] sm:$0xf]
    %v64 = vld [vmem:[#allocation5 + $0x4] sm:$0xf]
    %v65 = vld [vmem:[#allocation5 + $0x8] sm:$0xf]
    %v66 = vld [vmem:[#allocation5 + $0xc] sm:$0xf]
    %v67 = vld [vmem:[%s2] sm:$0x1]
    %v69 = vlaneseq
    %v70 = vshrl.u32 %v69, 7
    %v71 = vsub.s32 0, %v70
    %v72 = vrot.slane %v67, %v71
    %v78 = vunpack.c.l.b16 %v63
    %v79 = vunpack.c.l.b16 %v64
    %v80 = vunpack.c.l.b16 %v65
    %v81 = vunpack.c.l.b16 %v66
    %v82 = vpack.c.b16 %v79, %v78
    %v83 = vpack.c.b16 %v81, %v80
    %vm86 = vcmask 261120
    %v88 = vsel %vm86, %v62, 0
    %90 = vmatprep.subr.bf16.mxu0 0
    %91 = vmatpush1.bf16.msra.mxu0 %v82
    %92 = vmatprep.subr.bf16.mxu0 0
    %93 = vmatpush1.bf16.msra.mxu0 %v83
    %94 = vmatprep.subr.bf16.mxu0 0
    %95 = vmatpush1.bf16.msra.mxu0 0
    %96 = vmatprep.subr.bf16.mxu0 0
    %97 = vmatpush1.bf16.msra.mxu0 0
    %98 = vmatprep.subr.bf16.mxu0 0
    %99 = vmatpush1.bf16.msra.mxu0 0
    %100 = vmatprep.subr.bf16.mxu0 0
    %101 = vmatpush1.bf16.msra.mxu0 0
    %102 = vmatprep.subr.bf16.mxu0 0
    %103 = vmatpush1.bf16.msra.mxu0 0
    %104 = vmatprep.subr.bf16.mxu0 0
    %105 = vmatpush1.bf16.msra.mxu0 0
    %106 = vmatprep.subr.bf16.mxu0 0
    %107 = vmatpush1.bf16.msra.mxu0 0
    %108 = vmatprep.subr.bf16.mxu0 0
    %109 = vmatpush1.bf16.msra.mxu0 0
    %110 = vmatprep.subr.bf16.mxu0 0
    %111 = vmatpush1.bf16.msra.mxu0 0
    %112 = vmatprep.subr.bf16.mxu0 0
    %113 = vmatpush1.bf16.msra.mxu0 0
    %114 = vmatprep.subr.bf16.mxu0 0
    %115 = vmatpush1.bf16.msra.mxu0 0
    %116 = vmatprep.subr.bf16.mxu0 0
    %117 = vmatpush1.bf16.msra.mxu0 0
    %118 = vmatprep.subr.bf16.mxu0 0
    %119 = vmatpush1.bf16.msra.mxu0 0
    %120 = vmatprep.subr.bf16.mxu0 0
    %121 = vmatpush1.bf16.msra.mxu0 0
    %122 = vmatprep.mubr.bf16.mxu0 0
    %123 = vmatmul.mubr.bf16.gmra.mrb[0].mxu0 %v88
    %v124 = vpop.f32.mrb[0].mxu0
    %v125 = vadd.f32 %v72, %v124
    %v126 = vpop.f32.mrb[0].mxu0
    %v127 = vpop.f32.mrb[0].mxu0
    %v128 = vpop.f32.mrb[0].mxu0
    %129 = vdwg.mxu0
    %v130 = vpack.c.bf16 %v125, %v125
    %v131 = vtanh.bf16.pop %v130
    %v132 = vld [vmem:[#allocation7] sm:$0xf]
    %v133 = vld [vmem:[#allocation7 + $0x4] sm:$0xf]
    %v134 = vld [vmem:[#allocation7 + $0x8] sm:$0xf]
    %v135 = vld [vmem:[#allocation7 + $0xc] sm:$0xf]
    %v136 = vld [vmem:[#allocation7 + $0x10] sm:$0xf]
    %v137 = vld [vmem:[#allocation7 + $0x14] sm:$0xf]
    %v138 = vld [vmem:[#allocation7 + $0x18] sm:$0xf]
    %v139 = vld [vmem:[#allocation7 + $0x1c] sm:$0xf]
    %v140 = vld [vmem:[#allocation7 + $0x20] sm:$0xf]
    %v141 = vld [vmem:[#allocation7 + $0x24] sm:$0xf]
    %v142 = vld [vmem:[#allocation7 + $0x28] sm:$0xf]
    %v143 = vld [vmem:[#allocation7 + $0x2c] sm:$0xf]
    %v144 = vld [vmem:[#allocation7 + $0x30] sm:$0xf]
    %v145 = vld [vmem:[#allocation7 + $0x34] sm:$0xf]
    %v146 = vld [vmem:[#allocation7 + $0x38] sm:$0xf]
    %v147 = vld [vmem:[#allocation7 + $0x3c] sm:$0xf]
    %v148 = vld [vmem:[%s4] sm:$0x1]
    %v150 = vlaneseq
    %v151 = vshrl.u32 %v150, 7
    %v152 = vsub.s32 0, %v151
    %v153 = vrot.slane %v148, %v152
    %v171 = vunpack.c.l.b16 %v132
    %v172 = vunpack.c.l.b16 %v133
    %v173 = vunpack.c.l.b16 %v134
    %v174 = vunpack.c.l.b16 %v135
    %v175 = vunpack.c.l.b16 %v136
    %v176 = vunpack.c.l.b16 %v137
    %v177 = vunpack.c.l.b16 %v138
    %v178 = vunpack.c.l.b16 %v139
    %v179 = vunpack.c.l.b16 %v140
    %v180 = vunpack.c.l.b16 %v141
    %v181 = vunpack.c.l.b16 %v142
    %v182 = vunpack.c.l.b16 %v143
    %v183 = vunpack.c.l.b16 %v144
    %v184 = vunpack.c.l.b16 %v145
    %v185 = vunpack.c.l.b16 %v146
    %v186 = vunpack.c.l.b16 %v147
    %v187 = vpack.c.b16 %v172, %v171
    %v188 = vpack.c.b16 %v174, %v173
    %v189 = vpack.c.b16 %v176, %v175
    %v190 = vpack.c.b16 %v178, %v177
    %v191 = vpack.c.b16 %v180, %v179
    %v192 = vpack.c.b16 %v182, %v181
    %v193 = vpack.c.b16 %v184, %v183
    %v194 = vpack.c.b16 %v186, %v185
    %203 = vmatprep.subr.bf16.mxu0 0
    %204 = vmatpush1.bf16.msra.mxu0 %v187
    %205 = vmatprep.subr.bf16.mxu0 0
    %206 = vmatpush1.bf16.msra.mxu0 %v188
    %207 = vmatprep.subr.bf16.mxu0 0
    %208 = vmatpush1.bf16.msra.mxu0 %v189
    %209 = vmatprep.subr.bf16.mxu0 0
    %210 = vmatpush1.bf16.msra.mxu0 %v190
    %211 = vmatprep.subr.bf16.mxu0 0
    %212 = vmatpush1.bf16.msra.mxu0 %v191
    %213 = vmatprep.subr.bf16.mxu0 0
    %214 = vmatpush1.bf16.msra.mxu0 %v192
    %215 = vmatprep.subr.bf16.mxu0 0
    %216 = vmatpush1.bf16.msra.mxu0 %v193
    %217 = vmatprep.subr.bf16.mxu0 0
    %218 = vmatpush1.bf16.msra.mxu0 %v194
    %219 = vmatprep.subr.bf16.mxu0 0
    %220 = vmatpush1.bf16.msra.mxu0 0
    %221 = vmatprep.subr.bf16.mxu0 0
    %222 = vmatpush1.bf16.msra.mxu0 0
    %223 = vmatprep.subr.bf16.mxu0 0
    %224 = vmatpush1.bf16.msra.mxu0 0
    %225 = vmatprep.subr.bf16.mxu0 0
    %226 = vmatpush1.bf16.msra.mxu0 0
    %227 = vmatprep.subr.bf16.mxu0 0
    %228 = vmatpush1.bf16.msra.mxu0 0
    %229 = vmatprep.subr.bf16.mxu0 0
    %230 = vmatpush1.bf16.msra.mxu0 0
    %231 = vmatprep.subr.bf16.mxu0 0
    %232 = vmatpush1.bf16.msra.mxu0 0
    %233 = vmatprep.subr.bf16.mxu0 0
    %234 = vmatpush1.bf16.msra.mxu0 0
    %235 = vmatprep.mubr.bf16.mxu0 0
    %236 = vmatmul.mubr.bf16.gmra.mrb[0].mxu0 %v131
    %v237 = vpop.f32.mrb[0].mxu0
    %v238 = vadd.f32 %v153, %v237
    %v239 = vpop.f32.mrb[0].mxu0
    %v240 = vpop.f32.mrb[0].mxu0
    %v241 = vpop.f32.mrb[0].mxu0
    %242 = vdwg.mxu0
    %243 = vst [vmem:[#allocation8] sm:$0xff] %v238
    // Predicated region
    $region34: #{tpu_custom_call.1} parent=1 // pred_check
      _
    $region35: #{tpu_custom_call.1} parent=1 // pred_check_branch
      %245 = sbr.rel (0) target = $region37
    $region36: #{tpu_custom_call.1} parent=1 // pred_region
      %s247 = ssub.s32 128, 128
      %248 = vsyncadd [#allocation4], %s247
      %s250 = sshll.u32 [#allocation8], 4
      %s251 = int_to_ptr.vmem [resolvable:$true] %s250
      %253 = dma.vmem_to_hbm [thread:$0]  %s251, 128, %s5, [#allocation4]
    $region37: #{tpu_custom_call.1} parent=1 // pred_fallthru
      _
    // Predicated region
    $region38: #{tpu_custom_call.1} parent=1 // pred_check
      _
    $region39: #{tpu_custom_call.1} parent=1 // pred_check_branch
      %255 = sbr.rel (0) target = $region41
    $region40: #{tpu_custom_call.1} parent=1 // pred_region
      %256 = dma.done [#allocation4], 128
    $region41: #{tpu_custom_call.1} parent=1 // pred_fallthru
      _
    %257 = vsyncpa [#allocation3], 1
    %258 = vsyncpa [#allocation6], 1
    %259 = vsyncpa [#allocation4], 1

</llo_original>
